<compile_context>
chip_gen: v6e
topology: v6e:2x2x1
jax: 0.10.0
libtpu: 0.0.40
codegen_flags: <defaults>
</compile_context>

<pallas_src>
import functools

import jax
import jax.numpy as jnp
from jax.experimental import pallas as pl
from jax.experimental.pallas import tpu as pltpu

LANE = 128           # TPU vreg lane width
NEG_PAD = -1e30      # logit fill for padded output lanes -> exp() == 0
SPLIT_THRESHOLD = 256  # above this batch size, force >= 2 grid steps (v7x megacore)


def _round_up(n, m):
    return ((n + m - 1) // m) * m


def policy_net_kernel(x_ref,
                      w1_ref, b1_ref,
                      w2_ref, b2_ref,
                      w3_ref, b3_ref,
                      w4_ref, b4_ref,
                      o_ref):
    """One batch tile of the full PolicyNet forward pass.

    x_ref : (TB, F)        f32 input tile
    wK_ref: (inK, outK)    bf16 lane-padded weights (whole, grid-invariant)
    bK_ref: (1, outK)      f32 lane-padded biases (b4 pad lanes = NEG_PAD)
    o_ref : (TB, out_dim)  f32 softmax probabilities (real lanes only)
    """
    # bf16 operands + f32 accumulation: full-rate MXU on v6e/v7x, 2x on v5e.
    x = x_ref[...].astype(jnp.bfloat16)
    h = jnp.tanh(jnp.dot(x, w1_ref[...],
                         preferred_element_type=jnp.float32) + b1_ref[...])
    h = jnp.tanh(jnp.dot(h.astype(jnp.bfloat16), w2_ref[...],
                         preferred_element_type=jnp.float32) + b2_ref[...])
    h = jnp.tanh(jnp.dot(h.astype(jnp.bfloat16), w3_ref[...],
                         preferred_element_type=jnp.float32) + b3_ref[...])
    logits = (jnp.dot(h.astype(jnp.bfloat16), w4_ref[...],
                      preferred_element_type=jnp.float32) + b4_ref[...])

    # Numerically stable softmax on the lane-padded logits.  Pad lanes carry
    # NEG_PAD so exp() == 0 there: the denominator covers only real outputs.
    m = jnp.max(logits, axis=-1, keepdims=True)
    e = jnp.exp(logits - m)
    denom = jnp.sum(e, axis=-1, keepdims=True)
    o_dim = o_ref.shape[-1]
    # Exact divide (one op/row vs ~500 tanh/exp ops/row -> approx buys nothing).
    o_ref[...] = (e[:, :o_dim] / denom).astype(o_ref.dtype)


def _choose_batch_tile(B, tile_b):
    """Small batches: one grid step (no ~0.35us/step pipeline overhead).
    Larger batches: guarantee >= 2 steps so ("parallel",) shards across both
    v7x TensorCores, capped at tile_b (>=512 keeps HBM streaming efficient)."""
    if B <= SPLIT_THRESHOLD:
        return B
    return min(tile_b, _round_up(pl.cdiv(B, 2), 8))


@functools.partial(jax.jit, static_argnames=("out_dim", "tile_b"))
def policy_net_forward(x, params, *, out_dim, tile_b=512):
    """x: (B, F) float32.  params: lane-padded bf16/f32 params from pad_params()."""
    B, F = x.shape
    w1, b1 = params["w1"], params["b1"]
    w2, b2 = params["w2"], params["b2"]
    w3, b3 = params["w3"], params["b3"]
    w4, b4 = params["w4"], params["b4"]

    tb = _choose_batch_tile(B, tile_b)
    grid = (pl.cdiv(B, tb),)   # ragged tail handled by Pallas: no jnp.pad HBM copy

    # Weights/biases are grid-invariant (constant index_map -> one VMEM copy).
    whole = lambda i: (0, 0)

    return pl.pallas_call(
        policy_net_kernel,
        out_shape=jax.ShapeDtypeStruct((B, out_dim), jnp.float32),
        grid_spec=pltpu.PrefetchScalarGridSpec(
            num_scalar_prefetch=0,
            grid=grid,
            in_specs=[
                pl.BlockSpec((tb, F), lambda i: (i, 0)),          # x tile
                pl.BlockSpec(w1.shape, whole), pl.BlockSpec(b1.shape, whole),
                pl.BlockSpec(w2.shape, whole), pl.BlockSpec(b2.shape, whole),
                pl.BlockSpec(w3.shape, whole), pl.BlockSpec(b3.shape, whole),
                pl.BlockSpec(w4.shape, whole), pl.BlockSpec(b4.shape, whole),
            ],
            # Unpadded output: 64 B/row instead of 512 B/row of writeback.
            out_specs=pl.BlockSpec((tb, out_dim), lambda i: (i, 0)),
        ),
        compiler_params=pltpu.CompilerParams(
            dimension_semantics=("parallel",)),   # megacore-shardable on v7x
    )(x, w1, b1, w2, b2, w3, b3, w4, b4)


def init_params(key, features_n, outputs_n, layer1_n, layer2_n, layer3_n):
    """Unpadded f32 params, nn.Linear-style init, weights stored as (in, out)."""
    dims = [(features_n, layer1_n), (layer1_n, layer2_n),
            (layer2_n, layer3_n), (layer3_n, outputs_n)]
    params = {}
    keys = jax.random.split(key, 2 * len(dims))
    for idx, (fan_in, fan_out) in enumerate(dims):
        bound = 1.0 / float(fan_in) ** 0.5
        w = jax.random.uniform(keys[2 * idx], (fan_in, fan_out),
                               minval=-bound, maxval=bound, dtype=jnp.float32)
        b = jax.random.uniform(keys[2 * idx + 1], (1, fan_out),
                               minval=-bound, maxval=bound, dtype=jnp.float32)
        params[f"w{idx + 1}"] = w
        params[f"b{idx + 1}"] = b
    return params


def pad_params(params):
    """Zero-pad hidden/output dims to multiples of 128 (lane-dense MXU passes),
    cast weights to bf16 (halves weight DMA, full MXU rate), keep biases f32
    (added to the f32 accumulator).  Last-layer bias pad lanes get NEG_PAD so
    padded logits contribute exactly 0 to the softmax denominator.  The true
    input-feature dim stays unpadded (the x block uses the full array extent)."""
    padded = {}
    n_layers = 4
    for idx in range(1, n_layers + 1):
        w = params[f"w{idx}"]
        b = params[f"b{idx}"]
        in_dim, out_dim = w.shape
        in_pad = in_dim if idx == 1 else _round_up(in_dim, LANE)
        out_pad = _round_up(out_dim, LANE)
        w_p = jnp.zeros((in_pad, out_pad), jnp.float32).at[:in_dim, :out_dim].set(w)
        fill = NEG_PAD if idx == n_layers else 0.0
        b_p = jnp.full((1, out_pad), fill, jnp.float32).at[:, :out_dim].set(b)
        padded[f"w{idx}"] = w_p.astype(jnp.bfloat16)
        padded[f"b{idx}"] = b_p
    return padded


def reference_forward(x, params):
    h = jnp.tanh(x @ params["w1"] + params["b1"])
    h = jnp.tanh(h @ params["w2"] + params["b2"])
    h = jnp.tanh(h @ params["w3"] + params["b3"])
    logits = h @ params["w4"] + params["b4"]
    return jax.nn.softmax(logits, axis=-1)


if __name__ == "__main__":
    # Shapes implied by the module: features_n=32, outputs_n=16,
    # layer1_n=64, layer2_n=64, layer3_n=32, batch=16.
    features_n, outputs_n = 32, 16
    layer1_n, layer2_n, layer3_n = 64, 64, 32
    batch = 16

    key = jax.random.PRNGKey(0)
    kx, kx2, kp = jax.random.split(key, 3)
    x = jax.random.normal(kx, (batch, features_n), dtype=jnp.float32)
    params = init_params(kp, features_n, outputs_n, layer1_n, layer2_n, layer3_n)
    padded = pad_params(params)

    # Small-batch path: grid collapses to a single step.
    out = jax.block_until_ready(policy_net_forward(x, padded, out_dim=outputs_n))
    ref = reference_forward(x, params)
    assert out.shape == (batch, outputs_n)
    # Exact divide -> rows sum to 1 up to f32 rounding.
    assert jnp.allclose(jnp.sum(out, axis=-1), 1.0, atol=1e-5)
    # bf16 matmul operands (f32 accumulation) -> tolerance loosened vs pure f32.
    assert jnp.allclose(out, ref, atol=2e-2, rtol=2e-2)

    # Multi-step ragged-grid path (B > SPLIT_THRESHOLD, tail block partial).
    x2 = jax.random.normal(kx2, (400, features_n), dtype=jnp.float32)
    out2 = jax.block_until_ready(
        policy_net_forward(x2, padded, out_dim=outputs_n, tile_b=128))
    ref2 = reference_forward(x2, params)
    assert out2.shape == (400, outputs_n)
    assert jnp.allclose(jnp.sum(out2, axis=-1), 1.0, atol=1e-5)
    assert jnp.allclose(out2, ref2, atol=2e-2, rtol=2e-2)

    print("KERNEL_OK")
</pallas_src>

<mosaic_0001>
module attributes {stable_mosaic.version = 11 : i64} {
  func.func @policy_net_kernel(%arg0: i32, %arg1: memref<16x32xf32, #tpu.memory_space<vmem>>, %arg2: memref<32x128xbf16, #tpu.memory_space<vmem>>, %arg3: memref<1x128xf32, #tpu.memory_space<vmem>>, %arg4: memref<128x128xbf16, #tpu.memory_space<vmem>>, %arg5: memref<1x128xf32, #tpu.memory_space<vmem>>, %arg6: memref<128x128xbf16, #tpu.memory_space<vmem>>, %arg7: memref<1x128xf32, #tpu.memory_space<vmem>>, %arg8: memref<128x128xbf16, #tpu.memory_space<vmem>>, %arg9: memref<1x128xf32, #tpu.memory_space<vmem>>, %arg10: memref<16x16xf32, #tpu.memory_space<vmem>>) attributes {dimension_semantics = [#tpu.dimension_semantics<parallel>], iteration_bounds = array<i64: 1>, scalar_prefetch = 0 : i64, scratch_operands = 0 : i64, tpu.core_type = #tpu.core_type<tc>, window_params = [{transform_indices = @transform_0, window_bounds = array<i64: 16, 32>}, {pipeline_mode = #tpu.pipeline_mode<synchronous>, transform_indices = @transform_1, window_bounds = array<i64: 32, 128>}, {pipeline_mode = #tpu.pipeline_mode<synchronous>, transform_indices = @transform_2, window_bounds = array<i64: 1, 128>}, {pipeline_mode = #tpu.pipeline_mode<synchronous>, transform_indices = @transform_3, window_bounds = array<i64: 128, 128>}, {pipeline_mode = #tpu.pipeline_mode<synchronous>, transform_indices = @transform_4, window_bounds = array<i64: 1, 128>}, {pipeline_mode = #tpu.pipeline_mode<synchronous>, transform_indices = @transform_5, window_bounds = array<i64: 128, 128>}, {pipeline_mode = #tpu.pipeline_mode<synchronous>, transform_indices = @transform_6, window_bounds = array<i64: 1, 128>}, {pipeline_mode = #tpu.pipeline_mode<synchronous>, transform_indices = @transform_7, window_bounds = array<i64: 128, 128>}, {pipeline_mode = #tpu.pipeline_mode<synchronous>, transform_indices = @transform_8, window_bounds = array<i64: 1, 128>}, {transform_indices = @transform_9, window_bounds = array<i64: 16, 16>}]} {
    %c0 = arith.constant 0 : index
    %c0_0 = arith.constant 0 : index
    %0 = vector.load %arg1[%c0, %c0_0] : memref<16x32xf32, #tpu.memory_space<vmem>>, vector<16x32xf32>
    %1 = arith.truncf %0 : vector<16x32xf32> to vector<16x32xbf16>
    %c0_1 = arith.constant 0 : index
    %c0_2 = arith.constant 0 : index
    %2 = vector.load %arg2[%c0_1, %c0_2] : memref<32x128xbf16, #tpu.memory_space<vmem>>, vector<32x128xbf16>
    %cst = arith.constant dense<0.000000e+00> : vector<16x128xf32>
    %3 = tpu.matmul %1, %2, %cst {dimension_numbers = #tpu.dot_dimension_numbers<[1], [0], [0], [1], [0, 0, 1, 1], [], []>} : vector<16x32xbf16>, vector<32x128xbf16>, vector<16x128xf32> -> vector<16x128xf32>
    %c0_3 = arith.constant 0 : index
    %c0_4 = arith.constant 0 : index
    %4 = vector.load %arg3[%c0_3, %c0_4] : memref<1x128xf32, #tpu.memory_space<vmem>>, vector<1x128xf32>
    %5 = vector.broadcast %4 : vector<1x128xf32> to vector<16x128xf32>
    %6 = arith.addf %3, %5 : vector<16x128xf32>
    %7 = math.tanh %6 : vector<16x128xf32>
    %8 = arith.truncf %7 : vector<16x128xf32> to vector<16x128xbf16>
    %c0_5 = arith.constant 0 : index
    %c0_6 = arith.constant 0 : index
    %9 = vector.load %arg4[%c0_5, %c0_6] : memref<128x128xbf16, #tpu.memory_space<vmem>>, vector<128x128xbf16>
    %cst_7 = arith.constant dense<0.000000e+00> : vector<16x128xf32>
    %10 = tpu.matmul %8, %9, %cst_7 {dimension_numbers = #tpu.dot_dimension_numbers<[1], [0], [0], [1], [0, 0, 1, 1], [], []>} : vector<16x128xbf16>, vector<128x128xbf16>, vector<16x128xf32> -> vector<16x128xf32>
    %c0_8 = arith.constant 0 : index
    %c0_9 = arith.constant 0 : index
    %11 = vector.load %arg5[%c0_8, %c0_9] : memref<1x128xf32, #tpu.memory_space<vmem>>, vector<1x128xf32>
    %12 = vector.broadcast %11 : vector<1x128xf32> to vector<16x128xf32>
    %13 = arith.addf %10, %12 : vector<16x128xf32>
    %14 = math.tanh %13 : vector<16x128xf32>
    %15 = arith.truncf %14 : vector<16x128xf32> to vector<16x128xbf16>
    %c0_10 = arith.constant 0 : index
    %c0_11 = arith.constant 0 : index
    %16 = vector.load %arg6[%c0_10, %c0_11] : memref<128x128xbf16, #tpu.memory_space<vmem>>, vector<128x128xbf16>
    %cst_12 = arith.constant dense<0.000000e+00> : vector<16x128xf32>
    %17 = tpu.matmul %15, %16, %cst_12 {dimension_numbers = #tpu.dot_dimension_numbers<[1], [0], [0], [1], [0, 0, 1, 1], [], []>} : vector<16x128xbf16>, vector<128x128xbf16>, vector<16x128xf32> -> vector<16x128xf32>
    %c0_13 = arith.constant 0 : index
    %c0_14 = arith.constant 0 : index
    %18 = vector.load %arg7[%c0_13, %c0_14] : memref<1x128xf32, #tpu.memory_space<vmem>>, vector<1x128xf32>
    %19 = vector.broadcast %18 : vector<1x128xf32> to vector<16x128xf32>
    %20 = arith.addf %17, %19 : vector<16x128xf32>
    %21 = math.tanh %20 : vector<16x128xf32>
    %22 = arith.truncf %21 : vector<16x128xf32> to vector<16x128xbf16>
    %c0_15 = arith.constant 0 : index
    %c0_16 = arith.constant 0 : index
    %23 = vector.load %arg8[%c0_15, %c0_16] : memref<128x128xbf16, #tpu.memory_space<vmem>>, vector<128x128xbf16>
    %cst_17 = arith.constant dense<0.000000e+00> : vector<16x128xf32>
    %24 = tpu.matmul %22, %23, %cst_17 {dimension_numbers = #tpu.dot_dimension_numbers<[1], [0], [0], [1], [0, 0, 1, 1], [], []>} : vector<16x128xbf16>, vector<128x128xbf16>, vector<16x128xf32> -> vector<16x128xf32>
    %c0_18 = arith.constant 0 : index
    %c0_19 = arith.constant 0 : index
    %25 = vector.load %arg9[%c0_18, %c0_19] : memref<1x128xf32, #tpu.memory_space<vmem>>, vector<1x128xf32>
    %26 = vector.broadcast %25 : vector<1x128xf32> to vector<16x128xf32>
    %27 = arith.addf %24, %26 : vector<16x128xf32>
    %cst_20 = arith.constant dense<0xFF800000> : vector<16xf32>
    %28 = vector.multi_reduction <maximumf>, %27, %cst_20 [1] : vector<16x128xf32> to vector<16xf32>
    %29 = vector.shape_cast %28 : vector<16xf32> to vector<16x1xf32>
    %30 = vector.broadcast %29 : vector<16x1xf32> to vector<16x128xf32>
    %31 = arith.subf %27, %30 : vector<16x128xf32>
    %32 = math.exp %31 : vector<16x128xf32>
    %cst_21 = arith.constant dense<0.000000e+00> : vector<16xf32>
    %33 = vector.multi_reduction <add>, %32, %cst_21 [1] : vector<16x128xf32> to vector<16xf32>
    %34 = vector.shape_cast %33 : vector<16xf32> to vector<16x1xf32>
    %35 = vector.extract_strided_slice %32 {offsets = [0, 0], sizes = [16, 16], strides = [1, 1]} : vector<16x128xf32> to vector<16x16xf32>
    %36 = vector.broadcast %34 : vector<16x1xf32> to vector<16x16xf32>
    %37 = arith.divf %35, %36 : vector<16x16xf32>
    %c0_22 = arith.constant 0 : index
    %c0_23 = arith.constant 0 : index
    %38 = vector.load %arg10[%c0_22, %c0_23] : memref<16x16xf32, #tpu.memory_space<vmem>>, vector<16x16xf32>
    tpu.vector_store %arg10[%c0_22, %c0_23], %37 {strides = array<i32>} : memref<16x16xf32, #tpu.memory_space<vmem>>, vector<16x16xf32>,
    return
  }
  func.func @transform_0(%arg0: i32) -> (i32, i32) {
    %c0_i32 = arith.constant 0 : i32
    %c0_i32_0 = arith.constant 0 : i32
    return %arg0, %c0_i32 : i32, i32
  }
  func.func @transform_1(%arg0: i32) -> (i32, i32) {
    %c0_i32 = arith.constant 0 : i32
    %c0_i32_0 = arith.constant 0 : i32
    %c0_i32_1 = arith.constant 0 : i32
    return %c0_i32, %c0_i32_0 : i32, i32
  }
  func.func @transform_2(%arg0: i32) -> (i32, i32) {
    %c0_i32 = arith.constant 0 : i32
    %c0_i32_0 = arith.constant 0 : i32
    %c0_i32_1 = arith.constant 0 : i32
    return %c0_i32, %c0_i32_0 : i32, i32
  }
  func.func @transform_3(%arg0: i32) -> (i32, i32) {
    %c0_i32 = arith.constant 0 : i32
    %c0_i32_0 = arith.constant 0 : i32
    %c0_i32_1 = arith.constant 0 : i32
    return %c0_i32, %c0_i32_0 : i32, i32
  }
  func.func @transform_4(%arg0: i32) -> (i32, i32) {
    %c0_i32 = arith.constant 0 : i32
    %c0_i32_0 = arith.constant 0 : i32
    %c0_i32_1 = arith.constant 0 : i32
    return %c0_i32, %c0_i32_0 : i32, i32
  }
  func.func @transform_5(%arg0: i32) -> (i32, i32) {
    %c0_i32 = arith.constant 0 : i32
    %c0_i32_0 = arith.constant 0 : i32
    %c0_i32_1 = arith.constant 0 : i32
    return %c0_i32, %c0_i32_0 : i32, i32
  }
  func.func @transform_6(%arg0: i32) -> (i32, i32) {
    %c0_i32 = arith.constant 0 : i32
    %c0_i32_0 = arith.constant 0 : i32
    %c0_i32_1 = arith.constant 0 : i32
    return %c0_i32, %c0_i32_0 : i32, i32
  }
  func.func @transform_7(%arg0: i32) -> (i32, i32) {
    %c0_i32 = arith.constant 0 : i32
    %c0_i32_0 = arith.constant 0 : i32
    %c0_i32_1 = arith.constant 0 : i32
    return %c0_i32, %c0_i32_0 : i32, i32
  }
  func.func @transform_8(%arg0: i32) -> (i32, i32) {
    %c0_i32 = arith.constant 0 : i32
    %c0_i32_0 = arith.constant 0 : i32
    %c0_i32_1 = arith.constant 0 : i32
    return %c0_i32, %c0_i32_0 : i32, i32
  }
  func.func @transform_9(%arg0: i32) -> (i32, i32) {
    %c0_i32 = arith.constant 0 : i32
    %c0_i32_0 = arith.constant 0 : i32
    return %arg0, %c0_i32 : i32, i32
  }
}

</mosaic_0001>

<llo_original>
// kernel: policy_net_forward.1
$region0: #{policy_net_forward.1}
  #allocation0 [shape = 'u32[]', space=smem, size = 0x4, offset = 0x4, fixed_abs, tag = 'smem constant byte address 0x4 - core index']
  #allocation1 [shape = 'u32[144,128]{1,0:T(1,128)}', space=vmem, size = 0x12000, scoped, tag = 'internal scratch']
  %s0 = inlined_call_operand.hbm [shape: f32[16,32], index: 0, kind: input, shape index: {}]
  %s1 = inlined_call_operand.hbm [shape: bf16[32,128], index: 1, kind: input, shape index: {}]
  %s2 = inlined_call_operand.vmem [shape: f32[1,128], index: 2, kind: input, shape index: {}]
  %s3 = inlined_call_operand.hbm [shape: bf16[128,128], index: 3, kind: input, shape index: {}]
  %s4 = inlined_call_operand.vmem [shape: f32[1,128], index: 4, kind: input, shape index: {}]
  %s5 = inlined_call_operand.hbm [shape: bf16[128,128], index: 5, kind: input, shape index: {}]
  %s6 = inlined_call_operand.vmem [shape: f32[1,128], index: 6, kind: input, shape index: {}]
  %s7 = inlined_call_operand.hbm [shape: bf16[128,128], index: 7, kind: input, shape index: {}]
  %s8 = inlined_call_operand.vmem [shape: f32[1,128], index: 8, kind: input, shape index: {}]
  %s9 = inlined_call_operand.hbm [shape: f32[16,16], index: 9, kind: output, shape index: {}]
  %s10 = sld [smem:[#allocation0]]
  $region66: #{policy_net_forward.1} parent=0
    _
  %s12 = ssub.s32 1, %s10
  %s13 = scalar_select 0, %s12, %s10
  $region1: #{policy_net_forward.1} parent=0
    #allocation2 [shape = 'u8[8192]{0}', space=vmem, size = 0x2000, scoped, tag = 'input window, operand 0, single buffered']
    #allocation3 [shape = 's32[1]{0}', space=sflag, size = 0x4, scoped, tag = 'scoped memory for policy_net_forward.1']
    #allocation4 [shape = 's32[1]{0}', space=sflag, size = 0x4, scoped, tag = 'scoped memory for policy_net_forward.1']
    #allocation5 [shape = 'u8[8192]{0}', space=vmem, size = 0x2000, scoped, tag = 'input window, operand 1, single buffered']
    #allocation6 [shape = 's32[1]{0}', space=sflag, size = 0x4, scoped, tag = 'scoped memory for policy_net_forward.1']
    #allocation7 [shape = 'u8[32768]{0}', space=vmem, size = 0x8000, scoped, tag = 'input window, operand 3, single buffered']
    #allocation8 [shape = 'u8[32768]{0}', space=vmem, size = 0x8000, scoped, tag = 'input window, operand 5, single buffered']
    #allocation9 [shape = 's32[1]{0}', space=sflag, size = 0x4, scoped, tag = 'scoped memory for policy_net_forward.1']
    #allocation10 [shape = 'u8[32768]{0}', space=vmem, size = 0x8000, scoped, tag = 'input window, operand 7, single buffered']
    #allocation11 [shape = 'u8[8192]{0}', space=vmem, size = 0x2000, scoped, tag = 'output window, operand 0, single buffered']
    %14 = vsyncpa [#allocation3], 0
    %15 = vsyncpa [#allocation6], 0
    %16 = vsyncpa [#allocation9], 0
    %17 = vsyncpa [#allocation4], 0
    // Predicated region
    $region2: #{policy_net_forward.1} parent=1 // pred_check
      _
    $region3: #{policy_net_forward.1} parent=1 // pred_check_branch
      %19 = sbr.rel (0) target = $region5
    $region4: #{policy_net_forward.1} parent=1 // pred_region
      %s21 = ssub.s32 256, 256
      %22 = vsyncadd [#allocation3], %s21
      %s23 = sshll.u32 [#allocation2], 4
      %s24 = int_to_ptr.vmem [resolvable:$true] %s23
      %29 = dma.hbm_to_vmem [thread:$0]  %s0, 256, %s24, [#allocation3], 128, 128, 8
    $region5: #{policy_net_forward.1} parent=1 // pred_fallthru
      _
    // Predicated region
    $region6: #{policy_net_forward.1} parent=1 // pred_check
      _
    $region7: #{policy_net_forward.1} parent=1 // pred_check_branch
      %31 = sbr.rel (0) target = $region9
    $region8: #{policy_net_forward.1} parent=1 // pred_region
      %s33 = ssub.s32 256, 256
      %34 = vsyncadd [#allocation6], %s33
      %s35 = sshll.u32 [#allocation5], 4
      %s36 = int_to_ptr.vmem [resolvable:$true] %s35
      %41 = dma.hbm_to_vmem [thread:$0]  %s1, 256, %s36, [#allocation6], 64, 64, 4
    $region9: #{policy_net_forward.1} parent=1 // pred_fallthru
      _
    // Predicated region
    $region10: #{policy_net_forward.1} parent=1 // pred_check
      _
    $region11: #{policy_net_forward.1} parent=1 // pred_check_branch
      %43 = sbr.rel (0) target = $region13
    $region12: #{policy_net_forward.1} parent=1 // pred_region
      _
    $region13: #{policy_net_forward.1} parent=1 // pred_fallthru
      _
    // Predicated region
    $region14: #{policy_net_forward.1} parent=1 // pred_check
      _
    $region15: #{policy_net_forward.1} parent=1 // pred_check_branch
      %45 = sbr.rel (0) target = $region17
    $region16: #{policy_net_forward.1} parent=1 // pred_region
      %s47 = ssub.s32 1024, 1024
      %48 = vsyncadd [#allocation6], %s47
      %s49 = sshll.u32 [#allocation7], 4
      %s50 = int_to_ptr.vmem [resolvable:$true] %s49
      %55 = dma.hbm_to_vmem [thread:$0]  %s3, 1024, %s50, [#allocation6], 64, 64, 4
    $region17: #{policy_net_forward.1} parent=1 // pred_fallthru
      _
    // Predicated region
    $region18: #{policy_net_forward.1} parent=1 // pred_check
      _
    $region19: #{policy_net_forward.1} parent=1 // pred_check_branch
      %57 = sbr.rel (0) target = $region21
    $region20: #{policy_net_forward.1} parent=1 // pred_region
      _
    $region21: #{policy_net_forward.1} parent=1 // pred_fallthru
      _
    // Predicated region
    $region22: #{policy_net_forward.1} parent=1 // pred_check
      _
    $region23: #{policy_net_forward.1} parent=1 // pred_check_branch
      %59 = sbr.rel (0) target = $region25
    $region24: #{policy_net_forward.1} parent=1 // pred_region
      %s61 = ssub.s32 1024, 1024
      %62 = vsyncadd [#allocation9], %s61
      %s63 = sshll.u32 [#allocation8], 4
      %s64 = int_to_ptr.vmem [resolvable:$true] %s63
      %69 = dma.hbm_to_vmem [thread:$0]  %s5, 1024, %s64, [#allocation9], 64, 64, 4
    $region25: #{policy_net_forward.1} parent=1 // pred_fallthru
      _
    // Predicated region
    $region26: #{policy_net_forward.1} parent=1 // pred_check
      _
    $region27: #{policy_net_forward.1} parent=1 // pred_check_branch
      %71 = sbr.rel (0) target = $region29
    $region28: #{policy_net_forward.1} parent=1 // pred_region
      _
    $region29: #{policy_net_forward.1} parent=1 // pred_fallthru
      _
    // Predicated region
    $region30: #{policy_net_forward.1} parent=1 // pred_check
      _
    $region31: #{policy_net_forward.1} parent=1 // pred_check_branch
      %73 = sbr.rel (0) target = $region33
    $region32: #{policy_net_forward.1} parent=1 // pred_region
      %s75 = ssub.s32 1024, 1024
      %76 = vsyncadd [#allocation9], %s75
      %s77 = sshll.u32 [#allocation10], 4
      %s78 = int_to_ptr.vmem [resolvable:$true] %s77
      %83 = dma.hbm_to_vmem [thread:$0]  %s7, 1024, %s78, [#allocation9], 64, 64, 4
    $region33: #{policy_net_forward.1} parent=1 // pred_fallthru
      _
    // Predicated region
    $region34: #{policy_net_forward.1} parent=1 // pred_check
      _
    $region35: #{policy_net_forward.1} parent=1 // pred_check_branch
      %85 = sbr.rel (0) target = $region37
    $region36: #{policy_net_forward.1} parent=1 // pred_region
      _
    $region37: #{policy_net_forward.1} parent=1 // pred_fallthru
      _
    // Predicated region
    $region38: #{policy_net_forward.1} parent=1 // pred_check
      _
    $region39: #{policy_net_forward.1} parent=1 // pred_check_branch
      %87 = sbr.rel (0) target = $region41
    $region40: #{policy_net_forward.1} parent=1 // pred_region
      %88 = dma.done [#allocation3], 256
    $region41: #{policy_net_forward.1} parent=1 // pred_fallthru
      _
    // Predicated region
    $region42: #{policy_net_forward.1} parent=1 // pred_check
      _
    $region43: #{policy_net_forward.1} parent=1 // pred_check_branch
      %90 = sbr.rel (0) target = $region45
    $region44: #{policy_net_forward.1} parent=1 // pred_region
      %91 = dma.done [#allocation6], 256
    $region45: #{policy_net_forward.1} parent=1 // pred_fallthru
      _
    // Predicated region
    $region46: #{policy_net_forward.1} parent=1 // pred_check
      _
    $region47: #{policy_net_forward.1} parent=1 // pred_check_branch
      %93 = sbr.rel (0) target = $region49
    $region48: #{policy_net_forward.1} parent=1 // pred_region
      %94 = dma.done [#allocation6], 1024
    $region49: #{policy_net_forward.1} parent=1 // pred_fallthru
      _
    // Predicated region
    $region50: #{policy_net_forward.1} parent=1 // pred_check
      _
    $region51: #{policy_net_forward.1} parent=1 // pred_check_branch
      %96 = sbr.rel (0) target = $region53
    $region52: #{policy_net_forward.1} parent=1 // pred_region
      %97 = dma.done [#allocation9], 1024
    $region53: #{policy_net_forward.1} parent=1 // pred_fallthru
      _
    // Predicated region
    $region54: #{policy_net_forward.1} parent=1 // pred_check
      _
    $region55: #{policy_net_forward.1} parent=1 // pred_check_branch
      %99 = sbr.rel (0) target = $region57
    $region56: #{policy_net_forward.1} parent=1 // pred_region
      %100 = dma.done [#allocation9], 1024
    $region57: #{policy_net_forward.1} parent=1 // pred_fallthru
      _
    %v102 = vld [vmem:[#allocation2] sm:$0xff]
    %v103 = vld [vmem:[#allocation2 + $0x8] sm:$0xff]
    %v104 = vpack.c.bf16 %v103, %v102
    %v105 = vld [vmem:[#allocation5] sm:$0xf]
    %v106 = vld [vmem:[#allocation5 + $0x4] sm:$0xf]
    %v107 = vld [vmem:[#allocation5 + $0x8] sm:$0xf]
    %v108 = vld [vmem:[#allocation5 + $0xc] sm:$0xf]
    %v109 = vld [vmem:[%s2] sm:$0x1]
    %v111 = vlaneseq
    %v112 = vshrl.u32 %v111, 7
    %v113 = vsub.s32 0, %v112
    %v114 = vrot.slane %v109, %v113
    %v120 = vunpack.c.l.b16 %v105
    %v121 = vunpack.c.l.b16 %v106
    %v122 = vunpack.c.l.b16 %v107
    %v123 = vunpack.c.l.b16 %v108
    %v124 = vpack.c.b16 %v121, %v120
    %v125 = vpack.c.b16 %v123, %v122
    %vm128 = vcmask 261120
    %v130 = vsel %vm128, %v104, 0
    %132 = vmatprep.subr.bf16.mxu0 0
    %133 = vmatpush1.bf16.msra.mxu0 0
    %134 = vmatprep.subr.bf16.mxu0 0
    %135 = vmatpush1.bf16.msra.mxu0 0
    %136 = vmatprep.subr.bf16.mxu0 0
    %137 = vmatpush1.bf16.msra.mxu0 0
    %138 = vmatprep.subr.bf16.mxu0 0
    %139 = vmatpush1.bf16.msra.mxu0 0
    %140 = vmatprep.subr.bf16.mxu0 0
    %141 = vmatpush1.bf16.msra.mxu0 0
    %142 = vmatprep.subr.bf16.mxu0 0
    %143 = vmatpush1.bf16.msra.mxu0 0
    %144 = vmatprep.subr.bf16.mxu0 0
    %145 = vmatpush1.bf16.msra.mxu0 %v125
    %146 = vmatprep.subr.bf16.mxu0 0
    %147 = vmatpush1.bf16.msra.mxu0 %v124
    %148 = vmatprep.subr.bf16.mxu0 0
    %149 = vmatpush2.bf16.msra.mxu0 0
    %150 = vmatprep.subr.bf16.mxu0 0
    %151 = vmatpush2.bf16.msra.mxu0 0
    %152 = vmatprep.subr.bf16.mxu0 0
    %153 = vmatpush2.bf16.msra.mxu0 0
    %154 = vmatprep.subr.bf16.mxu0 0
    %155 = vmatpush2.bf16.msra.mxu0 0
    %156 = vmatprep.subr.bf16.mxu0 0
    %157 = vmatpush2.bf16.msra.mxu0 0
    %158 = vmatprep.subr.bf16.mxu0 0
    %159 = vmatpush2.bf16.msra.mxu0 0
    %160 = vmatprep.subr.bf16.mxu0 0
    %161 = vmatpush2.bf16.msra.mxu0 0
    %162 = vmatprep.subr.bf16.mxu0 0
    %163 = vmatpush2.bf16.msra.mxu0 0
    %164 = vmatprep.mubr.bf16.mxu0 0
    %165 = vmatmul.mubr.bf16.gmra.mxu0 %v130
    %v166 = vpop.f32.mrf.mxu0
    %v167 = vadd.f32 %v114, %v166
    %v168 = vpop.f32.mrf.mxu0
    %v169 = vpop.f32.mrf.mxu0
    %v170 = vadd.f32 %v114, %v169
    %v171 = vpop.f32.mrf.mxu0
    %172 = vdwg.mxu0
    %v173 = vtanh.pop %v167
    %v174 = vtanh.pop %v170
    %v175 = vpack.c.bf16 %v174, %v173
    %v176 = vld [vmem:[#allocation7] sm:$0xf]
    %v177 = vld [vmem:[#allocation7 + $0x4] sm:$0xf]
    %v178 = vld [vmem:[#allocation7 + $0x8] sm:$0xf]
    %v179 = vld [vmem:[#allocation7 + $0xc] sm:$0xf]
    %v180 = vld [vmem:[#allocation7 + $0x10] sm:$0xf]
    %v181 = vld [vmem:[#allocation7 + $0x14] sm:$0xf]
    %v182 = vld [vmem:[#allocation7 + $0x18] sm:$0xf]
    %v183 = vld [vmem:[#allocation7 + $0x1c] sm:$0xf]
    %v184 = vld [vmem:[#allocation7 + $0x20] sm:$0xf]
    %v185 = vld [vmem:[#allocation7 + $0x24] sm:$0xf]
    %v186 = vld [vmem:[#allocation7 + $0x28] sm:$0xf]
    %v187 = vld [vmem:[#allocation7 + $0x2c] sm:$0xf]
    %v188 = vld [vmem:[#allocation7 + $0x30] sm:$0xf]
    %v189 = vld [vmem:[#allocation7 + $0x34] sm:$0xf]
    %v190 = vld [vmem:[#allocation7 + $0x38] sm:$0xf]
    %v191 = vld [vmem:[#allocation7 + $0x3c] sm:$0xf]
    %v192 = vld [vmem:[%s4] sm:$0x1]
    %v194 = vlaneseq
    %v195 = vshrl.u32 %v194, 7
    %v196 = vsub.s32 0, %v195
    %v197 = vrot.slane %v192, %v196
    %v215 = vunpack.c.l.b16 %v176
    %v216 = vunpack.c.l.b16 %v177
    %v217 = vunpack.c.l.b16 %v178
    %v218 = vunpack.c.l.b16 %v179
    %v219 = vunpack.c.l.b16 %v180
    %v220 = vunpack.c.l.b16 %v181
    %v221 = vunpack.c.l.b16 %v182
    %v222 = vunpack.c.l.b16 %v183
    %v223 = vunpack.c.l.b16 %v184
    %v224 = vunpack.c.l.b16 %v185
    %v225 = vunpack.c.l.b16 %v186
    %v226 = vunpack.c.l.b16 %v187
    %v227 = vunpack.c.l.b16 %v188
    %v228 = vunpack.c.l.b16 %v189
    %v229 = vunpack.c.l.b16 %v190
    %v230 = vunpack.c.l.b16 %v191
    %v231 = vpack.c.b16 %v216, %v215
    %v232 = vpack.c.b16 %v218, %v217
    %v233 = vpack.c.b16 %v220, %v219
    %v234 = vpack.c.b16 %v222, %v221
    %v235 = vpack.c.b16 %v224, %v223
    %v236 = vpack.c.b16 %v226, %v225
    %v237 = vpack.c.b16 %v228, %v227
    %v238 = vpack.c.b16 %v230, %v229
    %247 = vmatprep.subr.bf16.mxu0 0
    %248 = vmatpush1.bf16.msra.mxu0 %v238
    %249 = vmatprep.subr.bf16.mxu0 0
    %250 = vmatpush1.bf16.msra.mxu0 %v237
    %251 = vmatprep.subr.bf16.mxu0 0
    %252 = vmatpush1.bf16.msra.mxu0 %v236
    %253 = vmatprep.subr.bf16.mxu0 0
    %254 = vmatpush1.bf16.msra.mxu0 %v235
    %255 = vmatprep.subr.bf16.mxu0 0
    %256 = vmatpush1.bf16.msra.mxu0 %v234
    %257 = vmatprep.subr.bf16.mxu0 0
    %258 = vmatpush1.bf16.msra.mxu0 %v233
    %259 = vmatprep.subr.bf16.mxu0 0
    %260 = vmatpush1.bf16.msra.mxu0 %v232
    %261 = vmatprep.subr.bf16.mxu0 0
    %262 = vmatpush1.bf16.msra.mxu0 %v231
    %263 = vmatprep.subr.bf16.mxu0 0
    %264 = vmatpush2.bf16.msra.mxu0 0
    %265 = vmatprep.subr.bf16.mxu0 0
    %266 = vmatpush2.bf16.msra.mxu0 0
    %267 = vmatprep.subr.bf16.mxu0 0
    %268 = vmatpush2.bf16.msra.mxu0 0
    %269 = vmatprep.subr.bf16.mxu0 0
    %270 = vmatpush2.bf16.msra.mxu0 0
    %271 = vmatprep.subr.bf16.mxu0 0
    %272 = vmatpush2.bf16.msra.mxu0 0
    %273 = vmatprep.subr.bf16.mxu0 0
    %274 = vmatpush2.bf16.msra.mxu0 0
    %275 = vmatprep.subr.bf16.mxu0 0
    %276 = vmatpush2.bf16.msra.mxu0 0
    %277 = vmatprep.subr.bf16.mxu0 0
    %278 = vmatpush2.bf16.msra.mxu0 0
    %279 = vmatprep.mubr.bf16.mxu0 0
    %280 = vmatmul.mubr.bf16.gmra.mxu0 %v175
    %v281 = vpop.f32.mrf.mxu0
    %v282 = vadd.f32 %v197, %v281
    %v283 = vpop.f32.mrf.mxu0
    %v284 = vpop.f32.mrf.mxu0
    %v285 = vadd.f32 %v197, %v284
    %v286 = vpop.f32.mrf.mxu0
    %287 = vdwg.mxu0
    %v288 = vtanh.pop %v282
    %v289 = vtanh.pop %v285
    %v290 = vpack.c.bf16 %v289, %v288
    %v291 = vld [vmem:[#allocation8] sm:$0xf]
    %v292 = vld [vmem:[#allocation8 + $0x4] sm:$0xf]
    %v293 = vld [vmem:[#allocation8 + $0x8] sm:$0xf]
    %v294 = vld [vmem:[#allocation8 + $0xc] sm:$0xf]
    %v295 = vld [vmem:[#allocation8 + $0x10] sm:$0xf]
    %v296 = vld [vmem:[#allocation8 + $0x14] sm:$0xf]
    %v297 = vld [vmem:[#allocation8 + $0x18] sm:$0xf]
    %v298 = vld [vmem:[#allocation8 + $0x1c] sm:$0xf]
    %v299 = vld [vmem:[#allocation8 + $0x20] sm:$0xf]
    %v300 = vld [vmem:[#allocation8 + $0x24] sm:$0xf]
    %v301 = vld [vmem:[#allocation8 + $0x28] sm:$0xf]
    %v302 = vld [vmem:[#allocation8 + $0x2c] sm:$0xf]
    %v303 = vld [vmem:[#allocation8 + $0x30] sm:$0xf]
    %v304 = vld [vmem:[#allocation8 + $0x34] sm:$0xf]
    %v305 = vld [vmem:[#allocation8 + $0x38] sm:$0xf]
    %v306 = vld [vmem:[#allocation8 + $0x3c] sm:$0xf]
    %v307 = vld [vmem:[%s6] sm:$0x1]
    %v309 = vlaneseq
    %v310 = vshrl.u32 %v309, 7
    %v311 = vsub.s32 0, %v310
    %v312 = vrot.slane %v307, %v311
    %v330 = vunpack.c.l.b16 %v291
    %v331 = vunpack.c.l.b16 %v292
    %v332 = vunpack.c.l.b16 %v293
    %v333 = vunpack.c.l.b16 %v294
    %v334 = vunpack.c.l.b16 %v295
    %v335 = vunpack.c.l.b16 %v296
    %v336 = vunpack.c.l.b16 %v297
    %v337 = vunpack.c.l.b16 %v298
    %v338 = vunpack.c.l.b16 %v299
    %v339 = vunpack.c.l.b16 %v300
    %v340 = vunpack.c.l.b16 %v301
    %v341 = vunpack.c.l.b16 %v302
    %v342 = vunpack.c.l.b16 %v303
    %v343 = vunpack.c.l.b16 %v304
    %v344 = vunpack.c.l.b16 %v305
    %v345 = vunpack.c.l.b16 %v306
    %v346 = vpack.c.b16 %v331, %v330
    %v347 = vpack.c.b16 %v333, %v332
    %v348 = vpack.c.b16 %v335, %v334
    %v349 = vpack.c.b16 %v337, %v336
    %v350 = vpack.c.b16 %v339, %v338
    %v351 = vpack.c.b16 %v341, %v340
    %v352 = vpack.c.b16 %v343, %v342
    %v353 = vpack.c.b16 %v345, %v344
    %362 = vmatprep.subr.bf16.mxu0 0
    %363 = vmatpush1.bf16.msra.mxu0 %v353
    %364 = vmatprep.subr.bf16.mxu0 0
    %365 = vmatpush1.bf16.msra.mxu0 %v352
    %366 = vmatprep.subr.bf16.mxu0 0
    %367 = vmatpush1.bf16.msra.mxu0 %v351
    %368 = vmatprep.subr.bf16.mxu0 0
    %369 = vmatpush1.bf16.msra.mxu0 %v350
    %370 = vmatprep.subr.bf16.mxu0 0
    %371 = vmatpush1.bf16.msra.mxu0 %v349
    %372 = vmatprep.subr.bf16.mxu0 0
    %373 = vmatpush1.bf16.msra.mxu0 %v348
    %374 = vmatprep.subr.bf16.mxu0 0
    %375 = vmatpush1.bf16.msra.mxu0 %v347
    %376 = vmatprep.subr.bf16.mxu0 0
    %377 = vmatpush1.bf16.msra.mxu0 %v346
    %378 = vmatprep.subr.bf16.mxu0 0
    %379 = vmatpush2.bf16.msra.mxu0 0
    %380 = vmatprep.subr.bf16.mxu0 0
    %381 = vmatpush2.bf16.msra.mxu0 0
    %382 = vmatprep.subr.bf16.mxu0 0
    %383 = vmatpush2.bf16.msra.mxu0 0
    %384 = vmatprep.subr.bf16.mxu0 0
    %385 = vmatpush2.bf16.msra.mxu0 0
    %386 = vmatprep.subr.bf16.mxu0 0
    %387 = vmatpush2.bf16.msra.mxu0 0
    %388 = vmatprep.subr.bf16.mxu0 0
    %389 = vmatpush2.bf16.msra.mxu0 0
    %390 = vmatprep.subr.bf16.mxu0 0
    %391 = vmatpush2.bf16.msra.mxu0 0
    %392 = vmatprep.subr.bf16.mxu0 0
    %393 = vmatpush2.bf16.msra.mxu0 0
    %394 = vmatprep.mubr.bf16.mxu0 0
    %395 = vmatmul.mubr.bf16.gmra.mxu0 %v290
    %v396 = vpop.f32.mrf.mxu0
    %v397 = vadd.f32 %v312, %v396
    %v398 = vpop.f32.mrf.mxu0
    %v399 = vpop.f32.mrf.mxu0
    %v400 = vadd.f32 %v312, %v399
    %v401 = vpop.f32.mrf.mxu0
    %402 = vdwg.mxu0
    %v403 = vtanh.pop %v397
    %v404 = vtanh.pop %v400
    %v405 = vpack.c.bf16 %v404, %v403
    %v406 = vld [vmem:[#allocation10] sm:$0xf]
    %v407 = vld [vmem:[#allocation10 + $0x4] sm:$0xf]
    %v408 = vld [vmem:[#allocation10 + $0x8] sm:$0xf]
    %v409 = vld [vmem:[#allocation10 + $0xc] sm:$0xf]
    %v410 = vld [vmem:[#allocation10 + $0x10] sm:$0xf]
    %v411 = vld [vmem:[#allocation10 + $0x14] sm:$0xf]
    %v412 = vld [vmem:[#allocation10 + $0x18] sm:$0xf]
    %v413 = vld [vmem:[#allocation10 + $0x1c] sm:$0xf]
    %v414 = vld [vmem:[#allocation10 + $0x20] sm:$0xf]
    %v415 = vld [vmem:[#allocation10 + $0x24] sm:$0xf]
    %v416 = vld [vmem:[#allocation10 + $0x28] sm:$0xf]
    %v417 = vld [vmem:[#allocation10 + $0x2c] sm:$0xf]
    %v418 = vld [vmem:[#allocation10 + $0x30] sm:$0xf]
    %v419 = vld [vmem:[#allocation10 + $0x34] sm:$0xf]
    %v420 = vld [vmem:[#allocation10 + $0x38] sm:$0xf]
    %v421 = vld [vmem:[#allocation10 + $0x3c] sm:$0xf]
    %v422 = vld [vmem:[%s8] sm:$0x1]
    %v424 = vlaneseq
    %v425 = vshrl.u32 %v424, 7
    %v426 = vsub.s32 0, %v425
    %v427 = vrot.slane %v422, %v426
    %v445 = vunpack.c.l.b16 %v406
    %v446 = vunpack.c.l.b16 %v407
    %v447 = vunpack.c.l.b16 %v408
    %v448 = vunpack.c.l.b16 %v409
    %v449 = vunpack.c.l.b16 %v410
    %v450 = vunpack.c.l.b16 %v411
    %v451 = vunpack.c.l.b16 %v412
    %v452 = vunpack.c.l.b16 %v413
    %v453 = vunpack.c.l.b16 %v414
    %v454 = vunpack.c.l.b16 %v415
    %v455 = vunpack.c.l.b16 %v416
    %v456 = vunpack.c.l.b16 %v417
    %v457 = vunpack.c.l.b16 %v418
    %v458 = vunpack.c.l.b16 %v419
    %v459 = vunpack.c.l.b16 %v420
    %v460 = vunpack.c.l.b16 %v421
    %v461 = vpack.c.b16 %v446, %v445
    %v462 = vpack.c.b16 %v448, %v447
    %v463 = vpack.c.b16 %v450, %v449
    %v464 = vpack.c.b16 %v452, %v451
    %v465 = vpack.c.b16 %v454, %v453
    %v466 = vpack.c.b16 %v456, %v455
    %v467 = vpack.c.b16 %v458, %v457
    %v468 = vpack.c.b16 %v460, %v459
    %477 = vmatprep.subr.bf16.mxu0 0
    %478 = vmatpush1.bf16.msra.mxu0 %v468
    %479 = vmatprep.subr.bf16.mxu0 0
    %480 = vmatpush1.bf16.msra.mxu0 %v467
    %481 = vmatprep.subr.bf16.mxu0 0
    %482 = vmatpush1.bf16.msra.mxu0 %v466
    %483 = vmatprep.subr.bf16.mxu0 0
    %484 = vmatpush1.bf16.msra.mxu0 %v465
    %485 = vmatprep.subr.bf16.mxu0 0
    %486 = vmatpush1.bf16.msra.mxu0 %v464
    %487 = vmatprep.subr.bf16.mxu0 0
    %488 = vmatpush1.bf16.msra.mxu0 %v463
    %489 = vmatprep.subr.bf16.mxu0 0
    %490 = vmatpush1.bf16.msra.mxu0 %v462
    %491 = vmatprep.subr.bf16.mxu0 0
    %492 = vmatpush1.bf16.msra.mxu0 %v461
    %493 = vmatprep.subr.bf16.mxu0 0
    %494 = vmatpush2.bf16.msra.mxu0 0
    %495 = vmatprep.subr.bf16.mxu0 0
    %496 = vmatpush2.bf16.msra.mxu0 0
    %497 = vmatprep.subr.bf16.mxu0 0
    %498 = vmatpush2.bf16.msra.mxu0 0
    %499 = vmatprep.subr.bf16.mxu0 0
    %500 = vmatpush2.bf16.msra.mxu0 0
    %501 = vmatprep.subr.bf16.mxu0 0
    %502 = vmatpush2.bf16.msra.mxu0 0
    %503 = vmatprep.subr.bf16.mxu0 0
    %504 = vmatpush2.bf16.msra.mxu0 0
    %505 = vmatprep.subr.bf16.mxu0 0
    %506 = vmatpush2.bf16.msra.mxu0 0
    %507 = vmatprep.subr.bf16.mxu0 0
    %508 = vmatpush2.bf16.msra.mxu0 0
    %509 = vmatprep.mubr.bf16.mxu0 0
    %510 = vmatmul.mubr.bf16.gmra.mxu0 %v405
    %v511 = vpop.f32.mrf.mxu0
    %v512 = vadd.f32 %v427, %v511
    %v513 = vpop.f32.mrf.mxu0
    %v514 = vpop.f32.mrf.mxu0
    %v515 = vadd.f32 %v427, %v514
    %v516 = vpop.f32.mrf.mxu0
    %517 = vdwg.mxu0
    %518 = vmax.xlane.f32.xlu0 %v512
    %v519 = vpop.xlane.xlu0 %518
    %520 = vmax.xlane.f32.xlu0 %v515
    %v521 = vpop.xlane.xlu0 %520
    %v522 = vsub.f32 %v512, %v519
    %v523 = vsub.f32 %v515, %v521
    %v524 = vmul.f32 %v522, 1.442695
    %v525 = vpow.pop %v524
    %v526 = vmul.f32 %v523, 1.442695
    %v527 = vpow.pop %v526
    %528 = vadd.xlane.f32.xlu0 %v525
    %v529 = vpop.xlane.xlu0 %528
    %530 = vadd.xlane.f32.xlu0 %v527
    %v531 = vpop.xlane.xlu0 %530
    %v532 = vrcp.pop %v529
    %v533 = vmul.f32 %v525, %v532
    %v534 = vrcp.pop %v531
    %v535 = vmul.f32 %v527, %v534
    %vm536 = vcmask 130048
    %537 = vst.msk [vmem:[#allocation11] sm:$0xff] %vm536, %v533
    %538 = vst.msk [vmem:[#allocation11 + $0x8] sm:$0xff] %vm536, %v535
    // Predicated region
    $region58: #{policy_net_forward.1} parent=1 // pred_check
      _
    $region59: #{policy_net_forward.1} parent=1 // pred_check_branch
      %540 = sbr.rel (0) target = $region61
    $region60: #{policy_net_forward.1} parent=1 // pred_region
      %s542 = ssub.s32 256, 256
      %543 = vsyncadd [#allocation4], %s542
      %s544 = sshll.u32 [#allocation11], 4
      %s545 = int_to_ptr.vmem [resolvable:$true] %s544
      %550 = dma.vmem_to_hbm [thread:$0]  %s545, 256, %s9, [#allocation4], 128, 128, 8
    $region61: #{policy_net_forward.1} parent=1 // pred_fallthru
      _
    // Predicated region
    $region62: #{policy_net_forward.1} parent=1 // pred_check
      _
    $region63: #{policy_net_forward.1} parent=1 // pred_check_branch
      %552 = sbr.rel (0) target = $region65
    $region64: #{policy_net_forward.1} parent=1 // pred_region
      %553 = dma.done [#allocation4], 256
    $region65: #{policy_net_forward.1} parent=1 // pred_fallthru
      _
    %554 = vsyncpa [#allocation3], 1
    %555 = vsyncpa [#allocation6], 1
    %556 = vsyncpa [#allocation9], 1
    %557 = vsyncpa [#allocation4], 1

</llo_original>
